<compile_context>
chip_gen: v5e
topology: v5e:2x2
jax: 0.10.0
libtpu: 0.0.40
codegen_flags: <defaults>
</compile_context>

<pallas_src>
import jax
import jax.numpy as jnp
from jax.experimental import pallas as pl
from jax.experimental.pallas import tpu as pltpu

IN_DIM = 512
HID_DIM = 512
OUT_DIM = 1


def _round_up(x: int, m: int) -> int:
    return ((x + m - 1) // m) * m


def _choose_bm(B: int, bm_req: int) -> int:
    """Pick a batch tile: multiple of 8 (ideally 128), never larger than B,
    and (for v7x megacore) capped so B > 128 yields at least 2 grid steps."""
    bm_req = max(128, _round_up(int(bm_req), 128))
    if B <= 8:
        return max(1, B)                      # tiny batch: block == full batch dim
    if B < 128:
        return (B // 8) * 8                   # largest multiple of 8 <= B
    if B > 128:
        # Keep >= 2 grid steps so the "parallel" batch axis uses both v7x TCs.
        bm_req = min(bm_req, _round_up(pl.cdiv(B, 2), 128))
    return min(bm_req, (B // 128) * 128)      # multiple of 128, <= B


def _vmem_limit_bytes(bm: int, x_itemsize: int, w_itemsize: int, x_buffers: int) -> int:
    x_bytes = x_buffers * bm * IN_DIM * x_itemsize          # pipelined x tiles
    w1_bytes = 2 * IN_DIM * HID_DIM * w_itemsize            # resident fc1 weight
    small = 2 * (2 * HID_DIM * 4)                           # b1 row + w2 row
    out_bytes = 2 * bm * OUT_DIM * 4                        # output tiles
    total = x_bytes + w1_bytes + small + out_bytes + (8 << 20)   # +8 MiB slack
    return int(_round_up(total, 1 << 20))


def code_distance_kernel(x_ref, w1_ref, b1_ref, w2_ref, b2_ref, o_ref):
    # x_ref:  (bm, 512)  input dtype (VMEM)   w1_ref: (512, 512) compute dtype (VMEM, resident)
    # b1_ref: (1, 512)   f32 (VMEM)           w2_ref: (1, 512)   f32 (VMEM, fc2 weight as a row)
    # b2_ref: (1, 1)     f32 (SMEM)           o_ref:  (bm, 1)    f32 (VMEM)
    cdt = w1_ref.dtype

    # fc1 on the MXU: cast activations to the matmul dtype (no-op if x already
    # arrives in compute dtype), accumulate in f32.
    x = x_ref[...].astype(cdt)
    h = jnp.dot(x, w1_ref[...], preferred_element_type=jnp.float32)
    h = jnp.maximum(h + b1_ref[...], 0.0)               # bias + ReLU on the VPU (f32)

    # fc2: N=1 "matmul" as broadcast-multiply + lane reduction (VPU + XLU),
    # keeping the MXU free for the next tile's fc1. b2 is a scalar from SMEM.
    y = jnp.sum(h * w2_ref[...], axis=-1, keepdims=True) + b2_ref[0, 0]
    o_ref[...] = y.astype(o_ref.dtype)


def code_distance_model(x, w1, b1, w2, b2, *, bm=1024,
                        compute_dtype=jnp.bfloat16,
                        x_buffers=2,
                        vmem_limit_bytes=None):
    """Forward pass of CodeDistanceModel. x: (B, 512) -> (B, 1) f32.

    * `compute_dtype` controls the fc1 matmul operand dtype (bf16 recommended;
      pass jnp.float32 for closer-to-exact numerics). Accumulation is always f32.
    * x may be passed in bf16 to halve the dominant HBM stream (v6e/v7x);
      the kernel casts internally, never the wrapper.
    * Pre-cast w1 to `compute_dtype` at weight-load time for repeated calls.
    """
    B, in_dim = x.shape
    assert in_dim == IN_DIM

    bm = _choose_bm(B, bm)
    grid = (pl.cdiv(B, bm),)   # ragged tail handled by Pallas boundary masking (no jnp.pad copy)

    # One-time parameter preparation (tiny arrays; w1 cast is skipped if already done by caller).
    w1c = w1 if w1.dtype == compute_dtype else w1.astype(compute_dtype)
    b1r = jnp.reshape(b1, (1, HID_DIM)).astype(jnp.float32)
    w2r = jnp.reshape(w2, (1, HID_DIM)).astype(jnp.float32)  # fc2 weight as a lane row
    b2s = jnp.reshape(b2, (1, 1)).astype(jnp.float32)         # scalar bias -> SMEM

    if vmem_limit_bytes is None:
        vmem_limit_bytes = _vmem_limit_bytes(
            bm, jnp.dtype(x.dtype).itemsize, jnp.dtype(compute_dtype).itemsize,
            max(2, int(x_buffers)))

    x_spec_kwargs = {}
    if int(x_buffers) > 2:
        # Optional deeper pipelining of the x stream (v6e, only if measured).
        x_spec_kwargs["pipeline_mode"] = pl.Buffered(int(x_buffers))
    x_spec = pl.BlockSpec((bm, IN_DIM), lambda i: (i, 0), **x_spec_kwargs)

    out = pl.pallas_call(
        code_distance_kernel,
        out_shape=jax.ShapeDtypeStruct((B, OUT_DIM), jnp.float32),
        grid_spec=pltpu.PrefetchScalarGridSpec(
            num_scalar_prefetch=0,
            grid=grid,
            in_specs=[
                x_spec,                                              # x tile (pipelined)
                pl.BlockSpec((IN_DIM, HID_DIM), lambda i: (0, 0)),   # w1 (constant index -> resident)
                pl.BlockSpec((1, HID_DIM), lambda i: (0, 0)),        # b1
                pl.BlockSpec((1, HID_DIM), lambda i: (0, 0)),        # w2 row
                pl.BlockSpec(memory_space=pltpu.MemorySpace.SMEM),   # b2 scalar in SMEM
            ],
            out_specs=pl.BlockSpec((bm, OUT_DIM), lambda i: (i, 0)),
        ),
        compiler_params=pltpu.CompilerParams(
            dimension_semantics=("parallel",),    # batch axis shards across TCs on v7x
            vmem_limit_bytes=int(vmem_limit_bytes),
        ),
    )(x, w1c, b1r, w2r, b2s)

    return out


def reference(x, w1, b1, w2, b2):
    h = jnp.maximum(x @ w1 + b1, 0.0)
    return h @ w2 + b2


if __name__ == "__main__":
    key = jax.random.PRNGKey(0)
    k_x, k_w1, k_b1, k_w2, k_b2 = jax.random.split(key, 5)

    # Deterministic parameter init (uniform, PyTorch-Linear-style bound 1/sqrt(fan_in)).
    bound1 = 1.0 / jnp.sqrt(IN_DIM)
    w1 = jax.random.uniform(k_w1, (IN_DIM, HID_DIM), jnp.float32, -bound1, bound1)
    b1 = jax.random.uniform(k_b1, (1, HID_DIM), jnp.float32, -bound1, bound1)
    bound2 = 1.0 / jnp.sqrt(HID_DIM)
    w2 = jax.random.uniform(k_w2, (HID_DIM, OUT_DIM), jnp.float32, -bound2, bound2)
    b2 = jax.random.uniform(k_b2, (1, OUT_DIM), jnp.float32, -bound2, bound2)

    model = jax.jit(code_distance_model)

    # Case 1: tiny batch (single small tile).
    B1 = 8
    x1 = jax.random.normal(k_x, (B1, IN_DIM), dtype=jnp.float32)
    out1 = jax.block_until_ready(model(x1, w1, b1, w2, b2))
    ref1 = reference(x1, w1, b1, w2, b2)
    assert out1.shape == (B1, OUT_DIM)
    err1 = float(jnp.max(jnp.abs(out1 - ref1)))
    assert jnp.allclose(out1, ref1, atol=5e-2, rtol=5e-2), f"case1 max abs err = {err1}"

    # Case 2: unaligned batch -> exercises the masked ragged-tail path (no pad copy)
    # and a 2-step grid (both v7x TensorCores).
    B2 = 300
    x2 = jax.random.normal(jax.random.PRNGKey(1), (B2, IN_DIM), dtype=jnp.float32)
    out2 = jax.block_until_ready(model(x2, w1, b1, w2, b2))
    ref2 = reference(x2, w1, b1, w2, b2)
    assert out2.shape == (B2, OUT_DIM)
    err2 = float(jnp.max(jnp.abs(out2 - ref2)))
    assert jnp.allclose(out2, ref2, atol=5e-2, rtol=5e-2), f"case2 max abs err = {err2}"

    print("KERNEL_OK")
</pallas_src>

<mosaic_0001>
module attributes {stable_mosaic.version = 11 : i64} {
  func.func @code_distance_kernel(%arg0: i32, %arg1: memref<8x512xf32, #tpu.memory_space<vmem>>, %arg2: memref<512x512xbf16, #tpu.memory_space<vmem>>, %arg3: memref<1x512xf32, #tpu.memory_space<vmem>>, %arg4: memref<1x512xf32, #tpu.memory_space<vmem>>, %arg5: memref<1x1xf32, #tpu.memory_space<smem>>, %arg6: memref<8x1xf32, #tpu.memory_space<vmem>>) attributes {dimension_semantics = [#tpu.dimension_semantics<parallel>], iteration_bounds = array<i64: 1>, scalar_prefetch = 0 : i64, scratch_operands = 0 : i64, tpu.core_type = #tpu.core_type<tc>, window_params = [{transform_indices = @transform_0, window_bounds = array<i64: 8, 512>}, {pipeline_mode = #tpu.pipeline_mode<synchronous>, transform_indices = @transform_1, window_bounds = array<i64: 512, 512>}, {pipeline_mode = #tpu.pipeline_mode<synchronous>, transform_indices = @transform_2, window_bounds = array<i64: 1, 512>}, {pipeline_mode = #tpu.pipeline_mode<synchronous>, transform_indices = @transform_3, window_bounds = array<i64: 1, 512>}, {transform_indices = @transform_4, window_bounds = array<i64: 1, 1>}, {transform_indices = @transform_5, window_bounds = array<i64: 8, 1>}]} {
    %c0 = arith.constant 0 : index
    %c0_0 = arith.constant 0 : index
    %0 = vector.load %arg1[%c0, %c0_0] : memref<8x512xf32, #tpu.memory_space<vmem>>, vector<8x512xf32>
    %1 = arith.truncf %0 : vector<8x512xf32> to vector<8x512xbf16>
    %c0_1 = arith.constant 0 : index
    %c0_2 = arith.constant 0 : index
    %2 = vector.load %arg2[%c0_1, %c0_2] : memref<512x512xbf16, #tpu.memory_space<vmem>>, vector<512x512xbf16>
    %cst = arith.constant dense<0.000000e+00> : vector<8x512xf32>
    %3 = tpu.matmul %1, %2, %cst {dimension_numbers = #tpu.dot_dimension_numbers<[1], [0], [0], [1], [0, 0, 1, 1], [], []>} : vector<8x512xbf16>, vector<512x512xbf16>, vector<8x512xf32> -> vector<8x512xf32>
    %c0_3 = arith.constant 0 : index
    %c0_4 = arith.constant 0 : index
    %4 = vector.load %arg3[%c0_3, %c0_4] : memref<1x512xf32, #tpu.memory_space<vmem>>, vector<1x512xf32>
    %5 = vector.broadcast %4 : vector<1x512xf32> to vector<8x512xf32>
    %6 = arith.addf %3, %5 : vector<8x512xf32>
    %cst_5 = arith.constant 0.000000e+00 : f32
    %7 = vector.broadcast %cst_5 : f32 to vector<8x512xf32>
    %8 = arith.maximumf %6, %7 : vector<8x512xf32>
    %c0_6 = arith.constant 0 : index
    %c0_7 = arith.constant 0 : index
    %9 = vector.load %arg4[%c0_6, %c0_7] : memref<1x512xf32, #tpu.memory_space<vmem>>, vector<1x512xf32>
    %10 = vector.broadcast %9 : vector<1x512xf32> to vector<8x512xf32>
    %11 = arith.mulf %8, %10 : vector<8x512xf32>
    %cst_8 = arith.constant dense<0.000000e+00> : vector<8xf32>
    %12 = vector.multi_reduction <add>, %11, %cst_8 [1] : vector<8x512xf32> to vector<8xf32>
    %13 = vector.shape_cast %12 : vector<8xf32> to vector<8x1xf32>
    %c0_9 = arith.constant 0 : index
    %c0_10 = arith.constant 0 : index
    %14 = memref.load %arg5[%c0_9, %c0_10] : memref<1x1xf32, #tpu.memory_space<smem>>
    %15 = vector.broadcast %14 : f32 to vector<8x1xf32>
    %16 = arith.addf %13, %15 : vector<8x1xf32>
    %c0_11 = arith.constant 0 : index
    %c0_12 = arith.constant 0 : index
    %17 = vector.load %arg6[%c0_11, %c0_12] : memref<8x1xf32, #tpu.memory_space<vmem>>, vector<8x1xf32>
    tpu.vector_store %arg6[%c0_11, %c0_12], %16 {strides = array<i32>} : memref<8x1xf32, #tpu.memory_space<vmem>>, vector<8x1xf32>,
    return
  }
  func.func @transform_0(%arg0: i32) -> (i32, i32) {
    %c0_i32 = arith.constant 0 : i32
    %c0_i32_0 = arith.constant 0 : i32
    return %arg0, %c0_i32 : i32, i32
  }
  func.func @transform_1(%arg0: i32) -> (i32, i32) {
    %c0_i32 = arith.constant 0 : i32
    %c0_i32_0 = arith.constant 0 : i32
    %c0_i32_1 = arith.constant 0 : i32
    return %c0_i32, %c0_i32_0 : i32, i32
  }
  func.func @transform_2(%arg0: i32) -> (i32, i32) {
    %c0_i32 = arith.constant 0 : i32
    %c0_i32_0 = arith.constant 0 : i32
    %c0_i32_1 = arith.constant 0 : i32
    return %c0_i32, %c0_i32_0 : i32, i32
  }
  func.func @transform_3(%arg0: i32) -> (i32, i32) {
    %c0_i32 = arith.constant 0 : i32
    %c0_i32_0 = arith.constant 0 : i32
    %c0_i32_1 = arith.constant 0 : i32
    return %c0_i32, %c0_i32_0 : i32, i32
  }
  func.func @transform_4(%arg0: i32) -> (i32, i32) {
    %c0_i32 = arith.constant 0 : i32
    %c0_i32_0 = arith.constant 0 : i32
    %c0_i32_1 = arith.constant 0 : i32
    return %c0_i32, %c0_i32_0 : i32, i32
  }
  func.func @transform_5(%arg0: i32) -> (i32, i32) {
    %c0_i32 = arith.constant 0 : i32
    %c0_i32_0 = arith.constant 0 : i32
    return %arg0, %c0_i32 : i32, i32
  }
}

</mosaic_0001>

<llo_original>
// kernel: code_distance_model.1
$region0: #{code_distance_model.1}
  #allocation0 [shape = 'u32[]', space=smem, size = 0x4, offset = 0x4, fixed_abs, tag = 'smem constant byte address 0x4 - core index']
  #allocation1 [shape = 'u32[72,128]{1,0:T(1,128)}', space=vmem, size = 0x9000, scoped, tag = 'internal scratch']
  #allocation2 [shape = 'f32[1,1]{1,0:T(1,128)S(6)}', space=smem, size = 0x200, scoped, tag = 'scoped memory for code_distance_model.1']
  %s0 = inlined_call_operand.vmem [shape: f32[8,512], index: 0, kind: input, shape index: {}]
  %s1 = inlined_call_operand.vmem [shape: bf16[512,512], index: 1, kind: input, shape index: {}]
  %s2 = inlined_call_operand.vmem [shape: f32[1,512], index: 2, kind: input, shape index: {}]
  %s3 = inlined_call_operand.vmem [shape: f32[1,512], index: 3, kind: input, shape index: {}]
  %s4 = inlined_call_operand.<no memory space> [shape: f32[1,1], index: 4, kind: input, shape index: {}]
  %s5 = inlined_call_operand.vmem [shape: f32[8,1], index: 5, kind: output, shape index: {}]
  %s6 = sld [smem:[#allocation0]]
  $region30: #{code_distance_model.1} parent=0
    _
  %s8 = ssub.s32 1, %s6
  %s9 = scalar_select 0, %s8, %s6
  %10 = sst [smem:[#allocation2]] %s4
  // Predicated region
  $region2: #{code_distance_model.1} parent=0 // pred_check
    _
  $region3: #{code_distance_model.1} parent=0 // pred_check_branch
    %12 = sbr.rel (0) target = $region5
  $region4: #{code_distance_model.1} parent=0 // pred_region
    _
  $region5: #{code_distance_model.1} parent=0 // pred_fallthru
    _
  // Predicated region
  $region6: #{code_distance_model.1} parent=0 // pred_check
    _
  $region7: #{code_distance_model.1} parent=0 // pred_check_branch
    %14 = sbr.rel (0) target = $region9
  $region8: #{code_distance_model.1} parent=0 // pred_region
    _
  $region9: #{code_distance_model.1} parent=0 // pred_fallthru
    _
  // Predicated region
  $region10: #{code_distance_model.1} parent=0 // pred_check
    _
  $region11: #{code_distance_model.1} parent=0 // pred_check_branch
    %16 = sbr.rel (0) target = $region13
  $region12: #{code_distance_model.1} parent=0 // pred_region
    _
  $region13: #{code_distance_model.1} parent=0 // pred_fallthru
    _
  // Predicated region
  $region14: #{code_distance_model.1} parent=0 // pred_check
    _
  $region15: #{code_distance_model.1} parent=0 // pred_check_branch
    %18 = sbr.rel (0) target = $region17
  $region16: #{code_distance_model.1} parent=0 // pred_region
    _
  $region17: #{code_distance_model.1} parent=0 // pred_fallthru
    _
  // Predicated region
  $region18: #{code_distance_model.1} parent=0 // pred_check
    _
  $region19: #{code_distance_model.1} parent=0 // pred_check_branch
    %20 = sbr.rel (0) target = $region21
  $region20: #{code_distance_model.1} parent=0 // pred_region
    _
  $region21: #{code_distance_model.1} parent=0 // pred_fallthru
    _
  %v21 = vld [vmem:[%s0] sm:$0xff]
  %v22 = vld [vmem:[%s0 + $0x8] sm:$0xff]
  %v23 = vld [vmem:[%s0 + $0x10] sm:$0xff]
  %v24 = vld [vmem:[%s0 + $0x18] sm:$0xff]
  %v25 = vpack.c.bf16 %v21, %v21
  %v26 = vpack.c.bf16 %v22, %v22
  %v27 = vpack.c.bf16 %v23, %v23
  %v28 = vpack.c.bf16 %v24, %v24
  %v29 = vld [vmem:[%s1] sm:$0xff]
  %v30 = vld [vmem:[%s1 + $0x8] sm:$0xff]
  %v31 = vld [vmem:[%s1 + $0x10] sm:$0xff]
  %v32 = vld [vmem:[%s1 + $0x18] sm:$0xff]
  %v33 = vld [vmem:[%s1 + $0x20] sm:$0xff]
  %v34 = vld [vmem:[%s1 + $0x28] sm:$0xff]
  %v35 = vld [vmem:[%s1 + $0x30] sm:$0xff]
  %v36 = vld [vmem:[%s1 + $0x38] sm:$0xff]
  %v37 = vld [vmem:[%s1 + $0x40] sm:$0xff]
  %v38 = vld [vmem:[%s1 + $0x48] sm:$0xff]
  %v39 = vld [vmem:[%s1 + $0x50] sm:$0xff]
  %v40 = vld [vmem:[%s1 + $0x58] sm:$0xff]
  %v41 = vld [vmem:[%s1 + $0x60] sm:$0xff]
  %v42 = vld [vmem:[%s1 + $0x68] sm:$0xff]
  %v43 = vld [vmem:[%s1 + $0x70] sm:$0xff]
  %v44 = vld [vmem:[%s1 + $0x78] sm:$0xff]
  %v45 = vld [vmem:[%s1 + $0x80] sm:$0xff]
  %v46 = vld [vmem:[%s1 + $0x88] sm:$0xff]
  %v47 = vld [vmem:[%s1 + $0x90] sm:$0xff]
  %v48 = vld [vmem:[%s1 + $0x98] sm:$0xff]
  %v49 = vld [vmem:[%s1 + $0xa0] sm:$0xff]
  %v50 = vld [vmem:[%s1 + $0xa8] sm:$0xff]
  %v51 = vld [vmem:[%s1 + $0xb0] sm:$0xff]
  %v52 = vld [vmem:[%s1 + $0xb8] sm:$0xff]
  %v53 = vld [vmem:[%s1 + $0xc0] sm:$0xff]
  %v54 = vld [vmem:[%s1 + $0xc8] sm:$0xff]
  %v55 = vld [vmem:[%s1 + $0xd0] sm:$0xff]
  %v56 = vld [vmem:[%s1 + $0xd8] sm:$0xff]
  %v57 = vld [vmem:[%s1 + $0xe0] sm:$0xff]
  %v58 = vld [vmem:[%s1 + $0xe8] sm:$0xff]
  %v59 = vld [vmem:[%s1 + $0xf0] sm:$0xff]
  %v60 = vld [vmem:[%s1 + $0xf8] sm:$0xff]
  %v61 = vld [vmem:[%s1 + $0x100] sm:$0xff]
  %v62 = vld [vmem:[%s1 + $0x108] sm:$0xff]
  %v63 = vld [vmem:[%s1 + $0x110] sm:$0xff]
  %v64 = vld [vmem:[%s1 + $0x118] sm:$0xff]
  %v65 = vld [vmem:[%s1 + $0x120] sm:$0xff]
  %v66 = vld [vmem:[%s1 + $0x128] sm:$0xff]
  %v67 = vld [vmem:[%s1 + $0x130] sm:$0xff]
  %v68 = vld [vmem:[%s1 + $0x138] sm:$0xff]
  %v69 = vld [vmem:[%s1 + $0x140] sm:$0xff]
  %v70 = vld [vmem:[%s1 + $0x148] sm:$0xff]
  %v71 = vld [vmem:[%s1 + $0x150] sm:$0xff]
  %v72 = vld [vmem:[%s1 + $0x158] sm:$0xff]
  %v73 = vld [vmem:[%s1 + $0x160] sm:$0xff]
  %v74 = vld [vmem:[%s1 + $0x168] sm:$0xff]
  %v75 = vld [vmem:[%s1 + $0x170] sm:$0xff]
  %v76 = vld [vmem:[%s1 + $0x178] sm:$0xff]
  %v77 = vld [vmem:[%s1 + $0x180] sm:$0xff]
  %v78 = vld [vmem:[%s1 + $0x188] sm:$0xff]
  %v79 = vld [vmem:[%s1 + $0x190] sm:$0xff]
  %v80 = vld [vmem:[%s1 + $0x198] sm:$0xff]
  %v81 = vld [vmem:[%s1 + $0x1a0] sm:$0xff]
  %v82 = vld [vmem:[%s1 + $0x1a8] sm:$0xff]
  %v83 = vld [vmem:[%s1 + $0x1b0] sm:$0xff]
  %v84 = vld [vmem:[%s1 + $0x1b8] sm:$0xff]
  %v85 = vld [vmem:[%s1 + $0x1c0] sm:$0xff]
  %v86 = vld [vmem:[%s1 + $0x1c8] sm:$0xff]
  %v87 = vld [vmem:[%s1 + $0x1d0] sm:$0xff]
  %v88 = vld [vmem:[%s1 + $0x1d8] sm:$0xff]
  %v89 = vld [vmem:[%s1 + $0x1e0] sm:$0xff]
  %v90 = vld [vmem:[%s1 + $0x1e8] sm:$0xff]
  %v91 = vld [vmem:[%s1 + $0x1f0] sm:$0xff]
  %v92 = vld [vmem:[%s1 + $0x1f8] sm:$0xff]
  %v93 = vld [vmem:[%s1 + $0x200] sm:$0xff]
  %v94 = vld [vmem:[%s1 + $0x208] sm:$0xff]
  %v95 = vld [vmem:[%s1 + $0x210] sm:$0xff]
  %v96 = vld [vmem:[%s1 + $0x218] sm:$0xff]
  %v97 = vld [vmem:[%s1 + $0x220] sm:$0xff]
  %v98 = vld [vmem:[%s1 + $0x228] sm:$0xff]
  %v99 = vld [vmem:[%s1 + $0x230] sm:$0xff]
  %v100 = vld [vmem:[%s1 + $0x238] sm:$0xff]
  %v101 = vld [vmem:[%s1 + $0x240] sm:$0xff]
  %v102 = vld [vmem:[%s1 + $0x248] sm:$0xff]
  %v103 = vld [vmem:[%s1 + $0x250] sm:$0xff]
  %v104 = vld [vmem:[%s1 + $0x258] sm:$0xff]
  %v105 = vld [vmem:[%s1 + $0x260] sm:$0xff]
  %v106 = vld [vmem:[%s1 + $0x268] sm:$0xff]
  %v107 = vld [vmem:[%s1 + $0x270] sm:$0xff]
  %v108 = vld [vmem:[%s1 + $0x278] sm:$0xff]
  %v109 = vld [vmem:[%s1 + $0x280] sm:$0xff]
  %v110 = vld [vmem:[%s1 + $0x288] sm:$0xff]
  %v111 = vld [vmem:[%s1 + $0x290] sm:$0xff]
  %v112 = vld [vmem:[%s1 + $0x298] sm:$0xff]
  %v113 = vld [vmem:[%s1 + $0x2a0] sm:$0xff]
  %v114 = vld [vmem:[%s1 + $0x2a8] sm:$0xff]
  %v115 = vld [vmem:[%s1 + $0x2b0] sm:$0xff]
  %v116 = vld [vmem:[%s1 + $0x2b8] sm:$0xff]
  %v117 = vld [vmem:[%s1 + $0x2c0] sm:$0xff]
  %v118 = vld [vmem:[%s1 + $0x2c8] sm:$0xff]
  %v119 = vld [vmem:[%s1 + $0x2d0] sm:$0xff]
  %v120 = vld [vmem:[%s1 + $0x2d8] sm:$0xff]
  %v121 = vld [vmem:[%s1 + $0x2e0] sm:$0xff]
  %v122 = vld [vmem:[%s1 + $0x2e8] sm:$0xff]
  %v123 = vld [vmem:[%s1 + $0x2f0] sm:$0xff]
  %v124 = vld [vmem:[%s1 + $0x2f8] sm:$0xff]
  %v125 = vld [vmem:[%s1 + $0x300] sm:$0xff]
  %v126 = vld [vmem:[%s1 + $0x308] sm:$0xff]
  %v127 = vld [vmem:[%s1 + $0x310] sm:$0xff]
  %v128 = vld [vmem:[%s1 + $0x318] sm:$0xff]
  %v129 = vld [vmem:[%s1 + $0x320] sm:$0xff]
  %v130 = vld [vmem:[%s1 + $0x328] sm:$0xff]
  %v131 = vld [vmem:[%s1 + $0x330] sm:$0xff]
  %v132 = vld [vmem:[%s1 + $0x338] sm:$0xff]
  %v133 = vld [vmem:[%s1 + $0x340] sm:$0xff]
  %v134 = vld [vmem:[%s1 + $0x348] sm:$0xff]
  %v135 = vld [vmem:[%s1 + $0x350] sm:$0xff]
  %v136 = vld [vmem:[%s1 + $0x358] sm:$0xff]
  %v137 = vld [vmem:[%s1 + $0x360] sm:$0xff]
  %v138 = vld [vmem:[%s1 + $0x368] sm:$0xff]
  %v139 = vld [vmem:[%s1 + $0x370] sm:$0xff]
  %v140 = vld [vmem:[%s1 + $0x378] sm:$0xff]
  %v141 = vld [vmem:[%s1 + $0x380] sm:$0xff]
  %v142 = vld [vmem:[%s1 + $0x388] sm:$0xff]
  %v143 = vld [vmem:[%s1 + $0x390] sm:$0xff]
  %v144 = vld [vmem:[%s1 + $0x398] sm:$0xff]
  %v145 = vld [vmem:[%s1 + $0x3a0] sm:$0xff]
  %v146 = vld [vmem:[%s1 + $0x3a8] sm:$0xff]
  %v147 = vld [vmem:[%s1 + $0x3b0] sm:$0xff]
  %v148 = vld [vmem:[%s1 + $0x3b8] sm:$0xff]
  %v149 = vld [vmem:[%s1 + $0x3c0] sm:$0xff]
  %v150 = vld [vmem:[%s1 + $0x3c8] sm:$0xff]
  %v151 = vld [vmem:[%s1 + $0x3d0] sm:$0xff]
  %v152 = vld [vmem:[%s1 + $0x3d8] sm:$0xff]
  %v153 = vld [vmem:[%s1 + $0x3e0] sm:$0xff]
  %v154 = vld [vmem:[%s1 + $0x3e8] sm:$0xff]
  %v155 = vld [vmem:[%s1 + $0x3f0] sm:$0xff]
  %v156 = vld [vmem:[%s1 + $0x3f8] sm:$0xff]
  %v157 = vld [vmem:[%s2] sm:$0xf]
  %v159 = vperm.slane %v157, 0
  %v160 = vperm.slane %v157, 1
  %v161 = vperm.slane %v157, 2
  %v162 = vperm.slane %v157, 3
  %v295 = vunpack.c.l.b16 %v29
  %v296 = vunpack.c.h.b16 %v29
  %v297 = vunpack.c.l.b16 %v30
  %v298 = vunpack.c.h.b16 %v30
  %v299 = vunpack.c.l.b16 %v31
  %v300 = vunpack.c.h.b16 %v31
  %v301 = vunpack.c.l.b16 %v32
  %v302 = vunpack.c.h.b16 %v32
  %v303 = vunpack.c.l.b16 %v33
  %v304 = vunpack.c.h.b16 %v33
  %v305 = vunpack.c.l.b16 %v34
  %v306 = vunpack.c.h.b16 %v34
  %v307 = vunpack.c.l.b16 %v35
  %v308 = vunpack.c.h.b16 %v35
  %v309 = vunpack.c.l.b16 %v36
  %v310 = vunpack.c.h.b16 %v36
  %v311 = vunpack.c.l.b16 %v37
  %v312 = vunpack.c.h.b16 %v37
  %v313 = vunpack.c.l.b16 %v38
  %v314 = vunpack.c.h.b16 %v38
  %v315 = vunpack.c.l.b16 %v39
  %v316 = vunpack.c.h.b16 %v39
  %v317 = vunpack.c.l.b16 %v40
  %v318 = vunpack.c.h.b16 %v40
  %v319 = vunpack.c.l.b16 %v41
  %v320 = vunpack.c.h.b16 %v41
  %v321 = vunpack.c.l.b16 %v42
  %v322 = vunpack.c.h.b16 %v42
  %v323 = vunpack.c.l.b16 %v43
  %v324 = vunpack.c.h.b16 %v43
  %v325 = vunpack.c.l.b16 %v44
  %v326 = vunpack.c.h.b16 %v44
  %v327 = vunpack.c.l.b16 %v45
  %v328 = vunpack.c.h.b16 %v45
  %v329 = vunpack.c.l.b16 %v46
  %v330 = vunpack.c.h.b16 %v46
  %v331 = vunpack.c.l.b16 %v47
  %v332 = vunpack.c.h.b16 %v47
  %v333 = vunpack.c.l.b16 %v48
  %v334 = vunpack.c.h.b16 %v48
  %v335 = vunpack.c.l.b16 %v49
  %v336 = vunpack.c.h.b16 %v49
  %v337 = vunpack.c.l.b16 %v50
  %v338 = vunpack.c.h.b16 %v50
  %v339 = vunpack.c.l.b16 %v51
  %v340 = vunpack.c.h.b16 %v51
  %v341 = vunpack.c.l.b16 %v52
  %v342 = vunpack.c.h.b16 %v52
  %v343 = vunpack.c.l.b16 %v53
  %v344 = vunpack.c.h.b16 %v53
  %v345 = vunpack.c.l.b16 %v54
  %v346 = vunpack.c.h.b16 %v54
  %v347 = vunpack.c.l.b16 %v55
  %v348 = vunpack.c.h.b16 %v55
  %v349 = vunpack.c.l.b16 %v56
  %v350 = vunpack.c.h.b16 %v56
  %v351 = vunpack.c.l.b16 %v57
  %v352 = vunpack.c.h.b16 %v57
  %v353 = vunpack.c.l.b16 %v58
  %v354 = vunpack.c.h.b16 %v58
  %v355 = vunpack.c.l.b16 %v59
  %v356 = vunpack.c.h.b16 %v59
  %v357 = vunpack.c.l.b16 %v60
  %v358 = vunpack.c.h.b16 %v60
  %v359 = vunpack.c.l.b16 %v61
  %v360 = vunpack.c.h.b16 %v61
  %v361 = vunpack.c.l.b16 %v62
  %v362 = vunpack.c.h.b16 %v62
  %v363 = vunpack.c.l.b16 %v63
  %v364 = vunpack.c.h.b16 %v63
  %v365 = vunpack.c.l.b16 %v64
  %v366 = vunpack.c.h.b16 %v64
  %v367 = vunpack.c.l.b16 %v65
  %v368 = vunpack.c.h.b16 %v65
  %v369 = vunpack.c.l.b16 %v66
  %v370 = vunpack.c.h.b16 %v66
  %v371 = vunpack.c.l.b16 %v67
  %v372 = vunpack.c.h.b16 %v67
  %v373 = vunpack.c.l.b16 %v68
  %v374 = vunpack.c.h.b16 %v68
  %v375 = vunpack.c.l.b16 %v69
  %v376 = vunpack.c.h.b16 %v69
  %v377 = vunpack.c.l.b16 %v70
  %v378 = vunpack.c.h.b16 %v70
  %v379 = vunpack.c.l.b16 %v71
  %v380 = vunpack.c.h.b16 %v71
  %v381 = vunpack.c.l.b16 %v72
  %v382 = vunpack.c.h.b16 %v72
  %v383 = vunpack.c.l.b16 %v73
  %v384 = vunpack.c.h.b16 %v73
  %v385 = vunpack.c.l.b16 %v74
  %v386 = vunpack.c.h.b16 %v74
  %v387 = vunpack.c.l.b16 %v75
  %v388 = vunpack.c.h.b16 %v75
  %v389 = vunpack.c.l.b16 %v76
  %v390 = vunpack.c.h.b16 %v76
  %v391 = vunpack.c.l.b16 %v77
  %v392 = vunpack.c.h.b16 %v77
  %v393 = vunpack.c.l.b16 %v78
  %v394 = vunpack.c.h.b16 %v78
  %v395 = vunpack.c.l.b16 %v79
  %v396 = vunpack.c.h.b16 %v79
  %v397 = vunpack.c.l.b16 %v80
  %v398 = vunpack.c.h.b16 %v80
  %v399 = vunpack.c.l.b16 %v81
  %v400 = vunpack.c.h.b16 %v81
  %v401 = vunpack.c.l.b16 %v82
  %v402 = vunpack.c.h.b16 %v82
  %v403 = vunpack.c.l.b16 %v83
  %v404 = vunpack.c.h.b16 %v83
  %v405 = vunpack.c.l.b16 %v84
  %v406 = vunpack.c.h.b16 %v84
  %v407 = vunpack.c.l.b16 %v85
  %v408 = vunpack.c.h.b16 %v85
  %v409 = vunpack.c.l.b16 %v86
  %v410 = vunpack.c.h.b16 %v86
  %v411 = vunpack.c.l.b16 %v87
  %v412 = vunpack.c.h.b16 %v87
  %v413 = vunpack.c.l.b16 %v88
  %v414 = vunpack.c.h.b16 %v88
  %v415 = vunpack.c.l.b16 %v89
  %v416 = vunpack.c.h.b16 %v89
  %v417 = vunpack.c.l.b16 %v90
  %v418 = vunpack.c.h.b16 %v90
  %v419 = vunpack.c.l.b16 %v91
  %v420 = vunpack.c.h.b16 %v91
  %v421 = vunpack.c.l.b16 %v92
  %v422 = vunpack.c.h.b16 %v92
  %v423 = vunpack.c.l.b16 %v93
  %v424 = vunpack.c.h.b16 %v93
  %v425 = vunpack.c.l.b16 %v94
  %v426 = vunpack.c.h.b16 %v94
  %v427 = vunpack.c.l.b16 %v95
  %v428 = vunpack.c.h.b16 %v95
  %v429 = vunpack.c.l.b16 %v96
  %v430 = vunpack.c.h.b16 %v96
  %v431 = vunpack.c.l.b16 %v97
  %v432 = vunpack.c.h.b16 %v97
  %v433 = vunpack.c.l.b16 %v98
  %v434 = vunpack.c.h.b16 %v98
  %v435 = vunpack.c.l.b16 %v99
  %v436 = vunpack.c.h.b16 %v99
  %v437 = vunpack.c.l.b16 %v100
  %v438 = vunpack.c.h.b16 %v100
  %v439 = vunpack.c.l.b16 %v101
  %v440 = vunpack.c.h.b16 %v101
  %v441 = vunpack.c.l.b16 %v102
  %v442 = vunpack.c.h.b16 %v102
  %v443 = vunpack.c.l.b16 %v103
  %v444 = vunpack.c.h.b16 %v103
  %v445 = vunpack.c.l.b16 %v104
  %v446 = vunpack.c.h.b16 %v104
  %v447 = vunpack.c.l.b16 %v105
  %v448 = vunpack.c.h.b16 %v105
  %v449 = vunpack.c.l.b16 %v106
  %v450 = vunpack.c.h.b16 %v106
  %v451 = vunpack.c.l.b16 %v107
  %v452 = vunpack.c.h.b16 %v107
  %v453 = vunpack.c.l.b16 %v108
  %v454 = vunpack.c.h.b16 %v108
  %v455 = vunpack.c.l.b16 %v109
  %v456 = vunpack.c.h.b16 %v109
  %v457 = vunpack.c.l.b16 %v110
  %v458 = vunpack.c.h.b16 %v110
  %v459 = vunpack.c.l.b16 %v111
  %v460 = vunpack.c.h.b16 %v111
  %v461 = vunpack.c.l.b16 %v112
  %v462 = vunpack.c.h.b16 %v112
  %v463 = vunpack.c.l.b16 %v113
  %v464 = vunpack.c.h.b16 %v113
  %v465 = vunpack.c.l.b16 %v114
  %v466 = vunpack.c.h.b16 %v114
  %v467 = vunpack.c.l.b16 %v115
  %v468 = vunpack.c.h.b16 %v115
  %v469 = vunpack.c.l.b16 %v116
  %v470 = vunpack.c.h.b16 %v116
  %v471 = vunpack.c.l.b16 %v117
  %v472 = vunpack.c.h.b16 %v117
  %v473 = vunpack.c.l.b16 %v118
  %v474 = vunpack.c.h.b16 %v118
  %v475 = vunpack.c.l.b16 %v119
  %v476 = vunpack.c.h.b16 %v119
  %v477 = vunpack.c.l.b16 %v120
  %v478 = vunpack.c.h.b16 %v120
  %v479 = vunpack.c.l.b16 %v121
  %v480 = vunpack.c.h.b16 %v121
  %v481 = vunpack.c.l.b16 %v122
  %v482 = vunpack.c.h.b16 %v122
  %v483 = vunpack.c.l.b16 %v123
  %v484 = vunpack.c.h.b16 %v123
  %v485 = vunpack.c.l.b16 %v124
  %v486 = vunpack.c.h.b16 %v124
  %v487 = vunpack.c.l.b16 %v125
  %v488 = vunpack.c.h.b16 %v125
  %v489 = vunpack.c.l.b16 %v126
  %v490 = vunpack.c.h.b16 %v126
  %v491 = vunpack.c.l.b16 %v127
  %v492 = vunpack.c.h.b16 %v127
  %v493 = vunpack.c.l.b16 %v128
  %v494 = vunpack.c.h.b16 %v128
  %v495 = vunpack.c.l.b16 %v129
  %v496 = vunpack.c.h.b16 %v129
  %v497 = vunpack.c.l.b16 %v130
  %v498 = vunpack.c.h.b16 %v130
  %v499 = vunpack.c.l.b16 %v131
  %v500 = vunpack.c.h.b16 %v131
  %v501 = vunpack.c.l.b16 %v132
  %v502 = vunpack.c.h.b16 %v132
  %v503 = vunpack.c.l.b16 %v133
  %v504 = vunpack.c.h.b16 %v133
  %v505 = vunpack.c.l.b16 %v134
  %v506 = vunpack.c.h.b16 %v134
  %v507 = vunpack.c.l.b16 %v135
  %v508 = vunpack.c.h.b16 %v135
  %v509 = vunpack.c.l.b16 %v136
  %v510 = vunpack.c.h.b16 %v136
  %v511 = vunpack.c.l.b16 %v137
  %v512 = vunpack.c.h.b16 %v137
  %v513 = vunpack.c.l.b16 %v138
  %v514 = vunpack.c.h.b16 %v138
  %v515 = vunpack.c.l.b16 %v139
  %v516 = vunpack.c.h.b16 %v139
  %v517 = vunpack.c.l.b16 %v140
  %v518 = vunpack.c.h.b16 %v140
  %v519 = vunpack.c.l.b16 %v141
  %v520 = vunpack.c.h.b16 %v141
  %v521 = vunpack.c.l.b16 %v142
  %v522 = vunpack.c.h.b16 %v142
  %v523 = vunpack.c.l.b16 %v143
  %v524 = vunpack.c.h.b16 %v143
  %v525 = vunpack.c.l.b16 %v144
  %v526 = vunpack.c.h.b16 %v144
  %v527 = vunpack.c.l.b16 %v145
  %v528 = vunpack.c.h.b16 %v145
  %v529 = vunpack.c.l.b16 %v146
  %v530 = vunpack.c.h.b16 %v146
  %v531 = vunpack.c.l.b16 %v147
  %v532 = vunpack.c.h.b16 %v147
  %v533 = vunpack.c.l.b16 %v148
  %v534 = vunpack.c.h.b16 %v148
  %v535 = vunpack.c.l.b16 %v149
  %v536 = vunpack.c.h.b16 %v149
  %v537 = vunpack.c.l.b16 %v150
  %v538 = vunpack.c.h.b16 %v150
  %v539 = vunpack.c.l.b16 %v151
  %v540 = vunpack.c.h.b16 %v151
  %v541 = vunpack.c.l.b16 %v152
  %v542 = vunpack.c.h.b16 %v152
  %v543 = vunpack.c.l.b16 %v153
  %v544 = vunpack.c.h.b16 %v153
  %v545 = vunpack.c.l.b16 %v154
  %v546 = vunpack.c.h.b16 %v154
  %v547 = vunpack.c.l.b16 %v155
  %v548 = vunpack.c.h.b16 %v155
  %v549 = vunpack.c.l.b16 %v156
  %v550 = vunpack.c.h.b16 %v156
  %v551 = vpack.c.b16 %v299, %v295
  %v552 = vpack.c.b16 %v300, %v296
  %v553 = vpack.c.b16 %v301, %v297
  %v554 = vpack.c.b16 %v302, %v298
  %v555 = vpack.c.b16 %v307, %v303
  %v556 = vpack.c.b16 %v308, %v304
  %v557 = vpack.c.b16 %v309, %v305
  %v558 = vpack.c.b16 %v310, %v306
  %v559 = vpack.c.b16 %v315, %v311
  %v560 = vpack.c.b16 %v316, %v312
  %v561 = vpack.c.b16 %v317, %v313
  %v562 = vpack.c.b16 %v318, %v314
  %v563 = vpack.c.b16 %v323, %v319
  %v564 = vpack.c.b16 %v324, %v320
  %v565 = vpack.c.b16 %v325, %v321
  %v566 = vpack.c.b16 %v326, %v322
  %v567 = vpack.c.b16 %v331, %v327
  %v568 = vpack.c.b16 %v332, %v328
  %v569 = vpack.c.b16 %v333, %v329
  %v570 = vpack.c.b16 %v334, %v330
  %v571 = vpack.c.b16 %v339, %v335
  %v572 = vpack.c.b16 %v340, %v336
  %v573 = vpack.c.b16 %v341, %v337
  %v574 = vpack.c.b16 %v342, %v338
  %v575 = vpack.c.b16 %v347, %v343
  %v576 = vpack.c.b16 %v348, %v344
  %v577 = vpack.c.b16 %v349, %v345
  %v578 = vpack.c.b16 %v350, %v346
  %v579 = vpack.c.b16 %v355, %v351
  %v580 = vpack.c.b16 %v356, %v352
  %v581 = vpack.c.b16 %v357, %v353
  %v582 = vpack.c.b16 %v358, %v354
  %v583 = vpack.c.b16 %v363, %v359
  %v584 = vpack.c.b16 %v364, %v360
  %v585 = vpack.c.b16 %v365, %v361
  %v586 = vpack.c.b16 %v366, %v362
  %v587 = vpack.c.b16 %v371, %v367
  %v588 = vpack.c.b16 %v372, %v368
  %v589 = vpack.c.b16 %v373, %v369
  %v590 = vpack.c.b16 %v374, %v370
  %v591 = vpack.c.b16 %v379, %v375
  %v592 = vpack.c.b16 %v380, %v376
  %v593 = vpack.c.b16 %v381, %v377
  %v594 = vpack.c.b16 %v382, %v378
  %v595 = vpack.c.b16 %v387, %v383
  %v596 = vpack.c.b16 %v388, %v384
  %v597 = vpack.c.b16 %v389, %v385
  %v598 = vpack.c.b16 %v390, %v386
  %v599 = vpack.c.b16 %v395, %v391
  %v600 = vpack.c.b16 %v396, %v392
  %v601 = vpack.c.b16 %v397, %v393
  %v602 = vpack.c.b16 %v398, %v394
  %v603 = vpack.c.b16 %v403, %v399
  %v604 = vpack.c.b16 %v404, %v400
  %v605 = vpack.c.b16 %v405, %v401
  %v606 = vpack.c.b16 %v406, %v402
  %v607 = vpack.c.b16 %v411, %v407
  %v608 = vpack.c.b16 %v412, %v408
  %v609 = vpack.c.b16 %v413, %v409
  %v610 = vpack.c.b16 %v414, %v410
  %v611 = vpack.c.b16 %v419, %v415
  %v612 = vpack.c.b16 %v420, %v416
  %v613 = vpack.c.b16 %v421, %v417
  %v614 = vpack.c.b16 %v422, %v418
  %v615 = vpack.c.b16 %v427, %v423
  %v616 = vpack.c.b16 %v428, %v424
  %v617 = vpack.c.b16 %v429, %v425
  %v618 = vpack.c.b16 %v430, %v426
  %v619 = vpack.c.b16 %v435, %v431
  %v620 = vpack.c.b16 %v436, %v432
  %v621 = vpack.c.b16 %v437, %v433
  %v622 = vpack.c.b16 %v438, %v434
  %v623 = vpack.c.b16 %v443, %v439
  %v624 = vpack.c.b16 %v444, %v440
  %v625 = vpack.c.b16 %v445, %v441
  %v626 = vpack.c.b16 %v446, %v442
  %v627 = vpack.c.b16 %v451, %v447
  %v628 = vpack.c.b16 %v452, %v448
  %v629 = vpack.c.b16 %v453, %v449
  %v630 = vpack.c.b16 %v454, %v450
  %v631 = vpack.c.b16 %v459, %v455
  %v632 = vpack.c.b16 %v460, %v456
  %v633 = vpack.c.b16 %v461, %v457
  %v634 = vpack.c.b16 %v462, %v458
  %v635 = vpack.c.b16 %v467, %v463
  %v636 = vpack.c.b16 %v468, %v464
  %v637 = vpack.c.b16 %v469, %v465
  %v638 = vpack.c.b16 %v470, %v466
  %v639 = vpack.c.b16 %v475, %v471
  %v640 = vpack.c.b16 %v476, %v472
  %v641 = vpack.c.b16 %v477, %v473
  %v642 = vpack.c.b16 %v478, %v474
  %v643 = vpack.c.b16 %v483, %v479
  %v644 = vpack.c.b16 %v484, %v480
  %v645 = vpack.c.b16 %v485, %v481
  %v646 = vpack.c.b16 %v486, %v482
  %v647 = vpack.c.b16 %v491, %v487
  %v648 = vpack.c.b16 %v492, %v488
  %v649 = vpack.c.b16 %v493, %v489
  %v650 = vpack.c.b16 %v494, %v490
  %v651 = vpack.c.b16 %v499, %v495
  %v652 = vpack.c.b16 %v500, %v496
  %v653 = vpack.c.b16 %v501, %v497
  %v654 = vpack.c.b16 %v502, %v498
  %v655 = vpack.c.b16 %v507, %v503
  %v656 = vpack.c.b16 %v508, %v504
  %v657 = vpack.c.b16 %v509, %v505
  %v658 = vpack.c.b16 %v510, %v506
  %v659 = vpack.c.b16 %v515, %v511
  %v660 = vpack.c.b16 %v516, %v512
  %v661 = vpack.c.b16 %v517, %v513
  %v662 = vpack.c.b16 %v518, %v514
  %v663 = vpack.c.b16 %v523, %v519
  %v664 = vpack.c.b16 %v524, %v520
  %v665 = vpack.c.b16 %v525, %v521
  %v666 = vpack.c.b16 %v526, %v522
  %v667 = vpack.c.b16 %v531, %v527
  %v668 = vpack.c.b16 %v532, %v528
  %v669 = vpack.c.b16 %v533, %v529
  %v670 = vpack.c.b16 %v534, %v530
  %v671 = vpack.c.b16 %v539, %v535
  %v672 = vpack.c.b16 %v540, %v536
  %v673 = vpack.c.b16 %v541, %v537
  %v674 = vpack.c.b16 %v542, %v538
  %v675 = vpack.c.b16 %v547, %v543
  %v676 = vpack.c.b16 %v548, %v544
  %v677 = vpack.c.b16 %v549, %v545
  %v678 = vpack.c.b16 %v550, %v546
  %807 = vmatpush.bf16.msra.mxu0 %v579
  %808 = vmatpush.bf16.msra.mxu0 %v575
  %809 = vmatpush.bf16.msra.mxu0 %v571
  %810 = vmatpush.bf16.msra.mxu0 %v567
  %811 = vmatpush.bf16.msra.mxu0 %v563
  %812 = vmatpush.bf16.msra.mxu0 %v559
  %813 = vmatpush.bf16.msra.mxu0 %v555
  %814 = vmatpush.bf16.msra.mxu0 %v551
  %815 = vmatmul.bf16.gmra.mxu0 %v25
  %v816 = vpop.f32.mrf.mxu0
  %v817 = vadd.f32 %v159, %v816
  %v818 = vpop.f32.mrf.mxu0
  %819 = vdwg.mxu0
  %820 = vmatpush.bf16.msra.mxu0 %v611
  %821 = vmatpush.bf16.msra.mxu0 %v607
  %822 = vmatpush.bf16.msra.mxu0 %v603
  %823 = vmatpush.bf16.msra.mxu0 %v599
  %824 = vmatpush.bf16.msra.mxu0 %v595
  %825 = vmatpush.bf16.msra.mxu0 %v591
  %826 = vmatpush.bf16.msra.mxu0 %v587
  %827 = vmatpush.bf16.msra.mxu0 %v583
  %828 = vmatmul.bf16.gmra.mxu0 %v26
  %v829 = vpop.f32.mrf.mxu0
  %v830 = vadd.f32 %v817, %v829
  %v831 = vpop.f32.mrf.mxu0
  %832 = vdwg.mxu0
  %833 = vmatpush.bf16.msra.mxu0 %v643
  %834 = vmatpush.bf16.msra.mxu0 %v639
  %835 = vmatpush.bf16.msra.mxu0 %v635
  %836 = vmatpush.bf16.msra.mxu0 %v631
  %837 = vmatpush.bf16.msra.mxu0 %v627
  %838 = vmatpush.bf16.msra.mxu0 %v623
  %839 = vmatpush.bf16.msra.mxu0 %v619
  %840 = vmatpush.bf16.msra.mxu0 %v615
  %841 = vmatmul.bf16.gmra.mxu0 %v27
  %v842 = vpop.f32.mrf.mxu0
  %v843 = vadd.f32 %v830, %v842
  %v844 = vpop.f32.mrf.mxu0
  %845 = vdwg.mxu0
  %846 = vmatpush.bf16.msra.mxu0 %v675
  %847 = vmatpush.bf16.msra.mxu0 %v671
  %848 = vmatpush.bf16.msra.mxu0 %v667
  %849 = vmatpush.bf16.msra.mxu0 %v663
  %850 = vmatpush.bf16.msra.mxu0 %v659
  %851 = vmatpush.bf16.msra.mxu0 %v655
  %852 = vmatpush.bf16.msra.mxu0 %v651
  %853 = vmatpush.bf16.msra.mxu0 %v647
  %854 = vmatmul.bf16.gmra.mxu0 %v28
  %v855 = vpop.f32.mrf.mxu0
  %v856 = vadd.f32 %v843, %v855
  %v857 = vpop.f32.mrf.mxu0
  %858 = vdwg.mxu0
  %859 = vmatpush.bf16.msra.mxu0 %v580
  %860 = vmatpush.bf16.msra.mxu0 %v576
  %861 = vmatpush.bf16.msra.mxu0 %v572
  %862 = vmatpush.bf16.msra.mxu0 %v568
  %863 = vmatpush.bf16.msra.mxu0 %v564
  %864 = vmatpush.bf16.msra.mxu0 %v560
  %865 = vmatpush.bf16.msra.mxu0 %v556
  %866 = vmatpush.bf16.msra.mxu0 %v552
  %867 = vmatmul.bf16.gmra.mxu0 %v25
  %v868 = vpop.f32.mrf.mxu0
  %v869 = vadd.f32 %v160, %v868
  %v870 = vpop.f32.mrf.mxu0
  %871 = vdwg.mxu0
  %872 = vmatpush.bf16.msra.mxu0 %v612
  %873 = vmatpush.bf16.msra.mxu0 %v608
  %874 = vmatpush.bf16.msra.mxu0 %v604
  %875 = vmatpush.bf16.msra.mxu0 %v600
  %876 = vmatpush.bf16.msra.mxu0 %v596
  %877 = vmatpush.bf16.msra.mxu0 %v592
  %878 = vmatpush.bf16.msra.mxu0 %v588
  %879 = vmatpush.bf16.msra.mxu0 %v584
  %880 = vmatmul.bf16.gmra.mxu0 %v26
  %v881 = vpop.f32.mrf.mxu0
  %v882 = vadd.f32 %v869, %v881
  %v883 = vpop.f32.mrf.mxu0
  %884 = vdwg.mxu0
  %885 = vmatpush.bf16.msra.mxu0 %v644
  %886 = vmatpush.bf16.msra.mxu0 %v640
  %887 = vmatpush.bf16.msra.mxu0 %v636
  %888 = vmatpush.bf16.msra.mxu0 %v632
  %889 = vmatpush.bf16.msra.mxu0 %v628
  %890 = vmatpush.bf16.msra.mxu0 %v624
  %891 = vmatpush.bf16.msra.mxu0 %v620
  %892 = vmatpush.bf16.msra.mxu0 %v616
  %893 = vmatmul.bf16.gmra.mxu0 %v27
  %v894 = vpop.f32.mrf.mxu0
  %v895 = vadd.f32 %v882, %v894
  %v896 = vpop.f32.mrf.mxu0
  %897 = vdwg.mxu0
  %898 = vmatpush.bf16.msra.mxu0 %v676
  %899 = vmatpush.bf16.msra.mxu0 %v672
  %900 = vmatpush.bf16.msra.mxu0 %v668
  %901 = vmatpush.bf16.msra.mxu0 %v664
  %902 = vmatpush.bf16.msra.mxu0 %v660
  %903 = vmatpush.bf16.msra.mxu0 %v656
  %904 = vmatpush.bf16.msra.mxu0 %v652
  %905 = vmatpush.bf16.msra.mxu0 %v648
  %906 = vmatmul.bf16.gmra.mxu0 %v28
  %v907 = vpop.f32.mrf.mxu0
  %v908 = vadd.f32 %v895, %v907
  %v909 = vpop.f32.mrf.mxu0
  %910 = vdwg.mxu0
  %911 = vmatpush.bf16.msra.mxu0 %v581
  %912 = vmatpush.bf16.msra.mxu0 %v577
  %913 = vmatpush.bf16.msra.mxu0 %v573
  %914 = vmatpush.bf16.msra.mxu0 %v569
  %915 = vmatpush.bf16.msra.mxu0 %v565
  %916 = vmatpush.bf16.msra.mxu0 %v561
  %917 = vmatpush.bf16.msra.mxu0 %v557
  %918 = vmatpush.bf16.msra.mxu0 %v553
  %919 = vmatmul.bf16.gmra.mxu0 %v25
  %v920 = vpop.f32.mrf.mxu0
  %v921 = vadd.f32 %v161, %v920
  %v922 = vpop.f32.mrf.mxu0
  %923 = vdwg.mxu0
  %924 = vmatpush.bf16.msra.mxu0 %v613
  %925 = vmatpush.bf16.msra.mxu0 %v609
  %926 = vmatpush.bf16.msra.mxu0 %v605
  %927 = vmatpush.bf16.msra.mxu0 %v601
  %928 = vmatpush.bf16.msra.mxu0 %v597
  %929 = vmatpush.bf16.msra.mxu0 %v593
  %930 = vmatpush.bf16.msra.mxu0 %v589
  %931 = vmatpush.bf16.msra.mxu0 %v585
  %932 = vmatmul.bf16.gmra.mxu0 %v26
  %v933 = vpop.f32.mrf.mxu0
  %v934 = vadd.f32 %v921, %v933
  %v935 = vpop.f32.mrf.mxu0
  %936 = vdwg.mxu0
  %937 = vmatpush.bf16.msra.mxu0 %v645
  %938 = vmatpush.bf16.msra.mxu0 %v641
  %939 = vmatpush.bf16.msra.mxu0 %v637
  %940 = vmatpush.bf16.msra.mxu0 %v633
  %941 = vmatpush.bf16.msra.mxu0 %v629
  %942 = vmatpush.bf16.msra.mxu0 %v625
  %943 = vmatpush.bf16.msra.mxu0 %v621
  %944 = vmatpush.bf16.msra.mxu0 %v617
  %945 = vmatmul.bf16.gmra.mxu0 %v27
  %v946 = vpop.f32.mrf.mxu0
  %v947 = vadd.f32 %v934, %v946
  %v948 = vpop.f32.mrf.mxu0
  %949 = vdwg.mxu0
  %950 = vmatpush.bf16.msra.mxu0 %v677
  %951 = vmatpush.bf16.msra.mxu0 %v673
  %952 = vmatpush.bf16.msra.mxu0 %v669
  %953 = vmatpush.bf16.msra.mxu0 %v665
  %954 = vmatpush.bf16.msra.mxu0 %v661
  %955 = vmatpush.bf16.msra.mxu0 %v657
  %956 = vmatpush.bf16.msra.mxu0 %v653
  %957 = vmatpush.bf16.msra.mxu0 %v649
  %958 = vmatmul.bf16.gmra.mxu0 %v28
  %v959 = vpop.f32.mrf.mxu0
  %v960 = vadd.f32 %v947, %v959
  %v961 = vpop.f32.mrf.mxu0
  %962 = vdwg.mxu0
  %963 = vmatpush.bf16.msra.mxu0 %v582
  %964 = vmatpush.bf16.msra.mxu0 %v578
  %965 = vmatpush.bf16.msra.mxu0 %v574
  %966 = vmatpush.bf16.msra.mxu0 %v570
  %967 = vmatpush.bf16.msra.mxu0 %v566
  %968 = vmatpush.bf16.msra.mxu0 %v562
  %969 = vmatpush.bf16.msra.mxu0 %v558
  %970 = vmatpush.bf16.msra.mxu0 %v554
  %971 = vmatmul.bf16.gmra.mxu0 %v25
  %v972 = vpop.f32.mrf.mxu0
  %v973 = vadd.f32 %v162, %v972
  %v974 = vpop.f32.mrf.mxu0
  %975 = vdwg.mxu0
  %976 = vmatpush.bf16.msra.mxu0 %v614
  %977 = vmatpush.bf16.msra.mxu0 %v610
  %978 = vmatpush.bf16.msra.mxu0 %v606
  %979 = vmatpush.bf16.msra.mxu0 %v602
  %980 = vmatpush.bf16.msra.mxu0 %v598
  %981 = vmatpush.bf16.msra.mxu0 %v594
  %982 = vmatpush.bf16.msra.mxu0 %v590
  %983 = vmatpush.bf16.msra.mxu0 %v586
  %984 = vmatmul.bf16.gmra.mxu0 %v26
  %v985 = vpop.f32.mrf.mxu0
  %v986 = vadd.f32 %v973, %v985
  %v987 = vpop.f32.mrf.mxu0
  %988 = vdwg.mxu0
  %989 = vmatpush.bf16.msra.mxu0 %v646
  %990 = vmatpush.bf16.msra.mxu0 %v642
  %991 = vmatpush.bf16.msra.mxu0 %v638
  %992 = vmatpush.bf16.msra.mxu0 %v634
  %993 = vmatpush.bf16.msra.mxu0 %v630
  %994 = vmatpush.bf16.msra.mxu0 %v626
  %995 = vmatpush.bf16.msra.mxu0 %v622
  %996 = vmatpush.bf16.msra.mxu0 %v618
  %997 = vmatmul.bf16.gmra.mxu0 %v27
  %v998 = vpop.f32.mrf.mxu0
  %v999 = vadd.f32 %v986, %v998
  %v1000 = vpop.f32.mrf.mxu0
  %1001 = vdwg.mxu0
  %1002 = vmatpush.bf16.msra.mxu0 %v678
  %1003 = vmatpush.bf16.msra.mxu0 %v674
  %1004 = vmatpush.bf16.msra.mxu0 %v670
  %1005 = vmatpush.bf16.msra.mxu0 %v666
  %1006 = vmatpush.bf16.msra.mxu0 %v662
  %1007 = vmatpush.bf16.msra.mxu0 %v658
  %1008 = vmatpush.bf16.msra.mxu0 %v654
  %1009 = vmatpush.bf16.msra.mxu0 %v650
  %1010 = vmatmul.bf16.gmra.mxu0 %v28
  %v1011 = vpop.f32.mrf.mxu0
  %v1012 = vadd.f32 %v999, %v1011
  %v1013 = vpop.f32.mrf.mxu0
  %1014 = vdwg.mxu0
  %v1015 = vmax.f32 %v856, 0.0
  %v1016 = vmax.f32 %v908, 0.0
  %v1017 = vmax.f32 %v960, 0.0
  %v1018 = vmax.f32 %v1012, 0.0
  %v1019 = vld [vmem:[%s3] sm:$0xf]
  %v1021 = vperm.slane %v1019, 0
  %v1022 = vperm.slane %v1019, 1
  %v1023 = vperm.slane %v1019, 2
  %v1024 = vperm.slane %v1019, 3
  %v1029 = vmul.f32 %v1015, %v1021
  %v1030 = vmul.f32 %v1016, %v1022
  %v1031 = vmul.f32 %v1017, %v1023
  %v1032 = vmul.f32 %v1018, %v1024
  %v1033 = vadd.f32 %v1029, %v1030
  %v1034 = vadd.f32 %v1033, %v1031
  %v1035 = vadd.f32 %v1034, %v1032
  %1036 = vadd.xlane.f32.xlu0 %v1035
  %v1037 = vpop.xlane.xlu0 %1036
  %s1038 = sld [smem:[#allocation2]]
  %v1039 = vstv %s1038
  %v1040 = vadd.f32 %v1037, %v1039
  %vm1041 = vcmask 7168
  %1042 = vst.msk [vmem:[%s5] sm:$0xff] %vm1041, %v1040
  // Predicated region
  $region22: #{code_distance_model.1} parent=0 // pred_check
    _
  $region23: #{code_distance_model.1} parent=0 // pred_check_branch
    %1044 = sbr.rel (0) target = $region25
  $region24: #{code_distance_model.1} parent=0 // pred_region
    _
  $region25: #{code_distance_model.1} parent=0 // pred_fallthru
    _
  // Predicated region
  $region26: #{code_distance_model.1} parent=0 // pred_check
    _
  $region27: #{code_distance_model.1} parent=0 // pred_check_branch
    %1046 = sbr.rel (0) target = $region29
  $region28: #{code_distance_model.1} parent=0 // pred_region
    _
  $region29: #{code_distance_model.1} parent=0 // pred_fallthru
    _

</llo_original>
